<compile_context>
chip_gen: v6e
topology: v6e:2x2x1
jax: 0.10.0
libtpu: 0.0.40
codegen_flags: <defaults>
</compile_context>

<pallas_src>
import functools

import jax
import jax.numpy as jnp
from jax.experimental import pallas as pl
from jax.experimental.pallas import tpu as pltpu


def _round_up(v, m):
    return ((v + m - 1) // m) * m


def _mase_kernel(insample_ref, forecast_ref, target_ref, mask_ref, out_ref,
                 *, freq, t_in, t_out, k, n_rows, tb):
    """One batch tile of `tb` folded rows; each folded row packs `k` series."""
    f32 = jnp.float32

    # ---- seasonal-naive in-sample absolute differences ----------------------
    x = insample_ref[...].astype(f32)                        # (tb, k*t_in)
    diff = jnp.abs(x[:, freq:] - x[:, :-freq])               # (tb, k*t_in - freq)

    # ---- masked forecast error ----------------------------------------------
    m = mask_ref[...].astype(f32)                            # (tb, k*t_out)
    err = jnp.abs(target_ref[...].astype(f32)
                  - forecast_ref[...].astype(f32))           # (tb, k*t_out)
    em = err * m                                             # (tb, k*t_out)

    if k == 1:
        # Plain path: one series per row, simple lane reductions.
        seg_sums = jnp.sum(diff, axis=1, keepdims=True)      # (tb, 1)
        em_sums = jnp.sum(em, axis=1, keepdims=True)         # (tb, 1)
    else:
        # Per-packed-series reductions as 0/1-matrix matmuls (MXU is idle).
        # seg_in[l, j] = 1 iff lane l is a *valid* seasonal diff of series j:
        #   j*t_in <= l < j*t_in + (t_in - freq).
        ld = k * t_in - freq
        li = jax.lax.broadcasted_iota(jnp.int32, (ld, k), 0)
        ji = jax.lax.broadcasted_iota(jnp.int32, (ld, k), 1)
        lo = ji * t_in
        seg_in = jnp.where((li >= lo) & (li < lo + (t_in - freq)),
                           1.0, 0.0).astype(f32)
        seg_sums = jnp.dot(diff, seg_in, preferred_element_type=f32)   # (tb, k)

        # seg_out[c, j] = 1 iff lane c belongs to series j's forecast horizon.
        lo_len = k * t_out
        ci = jax.lax.broadcasted_iota(jnp.int32, (lo_len, k), 0)
        jo = jax.lax.broadcasted_iota(jnp.int32, (lo_len, k), 1)
        base = jo * t_out
        seg_out = jnp.where((ci >= base) & (ci < base + t_out),
                            1.0, 0.0).astype(f32)
        em_sums = jnp.dot(em, seg_out, preferred_element_type=f32)     # (tb, k)

    # divide_no_nan(mask, masep): mask >= 0 and masep >= 0, so the only inputs
    # divide_no_nan zeroes are masep == 0 (-> inf / nan); guard exactly those.
    # masep = seg_sums / (t_in - freq)  =>  1/masep = (t_in - freq) / seg_sums.
    inv = jnp.where(seg_sums > 0.0, jnp.float32(t_in - freq) / seg_sums, 0.0)
    contrib = em_sums * inv                                  # (tb, k)

    if n_rows % tb != 0:
        # Zero the padded folded rows of the ragged last tile (their loaded
        # data is unspecified; the select keeps NaN/Inf from leaking).
        row = (jax.lax.broadcasted_iota(jnp.int32, contrib.shape, 0)
               + pl.program_id(0) * tb)
        contrib = jnp.where(row < n_rows, contrib, 0.0)

    # Sublane-only partial reduce; the final tiny reduce happens in the wrapper.
    out_ref[...] = jnp.sum(contrib, axis=0, keepdims=True)   # (1, k)


def mase_loss(insample, freq, forecast, target, mask, *,
              block_batch=None, fold_batch=None):
    """MASE loss.

    insample: (B, T_i); forecast/target/mask: (B, T_o); freq: static python int.
    `mask` is assumed to be a 0/1 (>= 0) mask, as in the reference module.
    Returns a scalar float32.
    """
    insample = jnp.asarray(insample)
    forecast = jnp.asarray(forecast)
    target = jnp.asarray(target)
    mask = jnp.asarray(mask)

    batch, t_in = insample.shape
    _, t_out = forecast.shape
    freq = int(freq)

    # ---- lane packing: fold k batch rows into the lane dimension ------------
    if fold_batch is None:
        kmax = max(1, min(128 // max(t_out, 1), 4096 // max(t_in, 1)))
        k = 1
        for cand in range(min(kmax, batch), 0, -1):
            if batch % cand == 0:
                k = cand
                break
    else:
        k = int(fold_batch)
        assert batch % k == 0, "fold_batch must divide batch"

    n_rows = batch // k
    l_in, l_out = k * t_in, k * t_out
    insample_f = insample.reshape(n_rows, l_in)
    forecast_f = forecast.reshape(n_rows, l_out)
    target_f = target.reshape(n_rows, l_out)
    mask_f = mask.reshape(n_rows, l_out)

    # ---- generation-aware VMEM budget on the *padded f32* footprint ---------
    # Blocks live in (8, 128) VMEM tiles and compute temporaries are f32, so
    # budget with lanes rounded up to 128 and 4 B per element.
    per_row_padded = 4 * (_round_up(l_in, 128) + 3 * _round_up(l_out, 128))
    try:
        info = pltpu.get_tpu_info()
        vmem_cap = int(getattr(info, "vmem_capacity_bytes", 64 << 20))
    except Exception:           # no TPU info -> assume the smallest (v7x) VMEM
        vmem_cap = 64 << 20
    if vmem_cap <= (80 << 20):          # v7x-class: 64 MiB physical VMEM
        tile_budget, vmem_ceiling = 4 << 20, 48 << 20
    else:                               # v5e / v6e: 128 MiB physical VMEM
        tile_budget, vmem_ceiling = 12 << 20, 64 << 20

    if block_batch is None:
        tb = max(1, tile_budget // per_row_padded)
    else:
        tb = int(block_batch)
    if tb >= n_rows:
        tb = n_rows
        if block_batch is None and n_rows >= 16:
            # Keep >= 2 tiles so the "parallel" axis can feed both v7x cores.
            tb = min(n_rows, _round_up((n_rows + 1) // 2, 8))
    else:
        tb = max(8, (tb // 8) * 8)      # sublane-aligned batch tile
    num_tiles = (n_rows + tb - 1) // tb

    block_padded = tb * per_row_padded
    vmem_limit = int(min(vmem_ceiling,
                         max(16 << 20, 5 * block_padded + (2 << 20))))

    kernel = functools.partial(_mase_kernel, freq=freq, t_in=t_in, t_out=t_out,
                               k=k, n_rows=n_rows, tb=tb)

    partials = pl.pallas_call(
        kernel,
        out_shape=jax.ShapeDtypeStruct((num_tiles, k), jnp.float32),
        grid=(num_tiles,),
        in_specs=[
            pl.BlockSpec((tb, l_in), lambda i: (i, 0)),
            pl.BlockSpec((tb, l_out), lambda i: (i, 0)),
            pl.BlockSpec((tb, l_out), lambda i: (i, 0)),
            pl.BlockSpec((tb, l_out), lambda i: (i, 0)),
        ],
        out_specs=pl.BlockSpec((1, k), lambda i: (i, 0)),
        compiler_params=pltpu.CompilerParams(
            dimension_semantics=("parallel",),
            vmem_limit_bytes=vmem_limit,
        ),
    )(insample_f, forecast_f, target_f, mask_f)

    # Exact global mean: sum of partial sums / (B * T_out).
    return jnp.sum(partials) / (batch * t_out)


def _reference(insample, freq, forecast, target, mask):
    # Pure-JAX mirror of the PyTorch module for a sanity check.
    masep = jnp.mean(jnp.abs(insample[:, freq:] - insample[:, :-freq]), axis=1)
    r = mask / masep[:, None]
    r = jnp.where(jnp.isnan(r) | (r == jnp.inf), 0.0, r)
    return jnp.mean(jnp.abs(target - forecast) * r)


if __name__ == "__main__":
    key = jax.random.PRNGKey(0)
    k1, k2, k3, k4 = jax.random.split(key, 4)

    B, T_IN, T_OUT, FREQ = 20, 24, 8, 2
    insample = jax.random.normal(k1, (B, T_IN), dtype=jnp.float32)
    insample = insample.at[0].set(1.0)   # constant row -> masep == 0 (divide_no_nan path)
    forecast = jax.random.normal(k2, (B, T_OUT), dtype=jnp.float32)
    target = jax.random.normal(k3, (B, T_OUT), dtype=jnp.float32)
    mask = (jax.random.uniform(k4, (B, T_OUT)) > 0.3).astype(jnp.float32)

    ref = _reference(insample, FREQ, forecast, target, mask)

    # Lane-folded path (k = 10 -> 2 folded rows, single tile).
    loss_folded = jax.block_until_ready(
        mase_loss(insample, FREQ, forecast, target, mask))
    # Unfolded path, multi-tile with ragged last tile (20 = 8 + 8 + 4).
    loss_plain = jax.block_until_ready(
        mase_loss(insample, FREQ, forecast, target, mask,
                  block_batch=8, fold_batch=1))

    assert jnp.allclose(loss_folded, ref, rtol=1e-5, atol=1e-6), (loss_folded, ref)
    assert jnp.allclose(loss_plain, ref, rtol=1e-5, atol=1e-6), (loss_plain, ref)

    # Larger batch: folded (k = 16 -> 21 folded rows) multi-tile with a ragged
    # last tile (21 = 8 + 8 + 5).
    B2 = 336
    j1, j2, j3, j4 = jax.random.split(jax.random.PRNGKey(1), 4)
    insample2 = jax.random.normal(j1, (B2, T_IN), dtype=jnp.float32)
    insample2 = insample2.at[3].set(0.5)   # another masep == 0 row
    forecast2 = jax.random.normal(j2, (B2, T_OUT), dtype=jnp.float32)
    target2 = jax.random.normal(j3, (B2, T_OUT), dtype=jnp.float32)
    mask2 = (jax.random.uniform(j4, (B2, T_OUT)) > 0.3).astype(jnp.float32)

    ref2 = _reference(insample2, FREQ, forecast2, target2, mask2)
    loss2 = jax.block_until_ready(
        mase_loss(insample2, FREQ, forecast2, target2, mask2, block_batch=8))
    assert jnp.allclose(loss2, ref2, rtol=1e-5, atol=1e-6), (loss2, ref2)

    print("KERNEL_OK")
</pallas_src>

<mosaic_0001>
module attributes {stable_mosaic.version = 11 : i64} {
  func.func @_mase_kernel(%arg0: i32, %arg1: memref<2x240xf32, #tpu.memory_space<vmem>>, %arg2: memref<2x80xf32, #tpu.memory_space<vmem>>, %arg3: memref<2x80xf32, #tpu.memory_space<vmem>>, %arg4: memref<2x80xf32, #tpu.memory_space<vmem>>, %arg5: memref<1x10xf32, #tpu.memory_space<vmem>>) attributes {dimension_semantics = [#tpu.dimension_semantics<parallel>], iteration_bounds = array<i64: 1>, scalar_prefetch = 0 : i64, scratch_operands = 0 : i64, tpu.core_type = #tpu.core_type<tc>, window_params = [{transform_indices = @transform_0, window_bounds = array<i64: 2, 240>}, {transform_indices = @transform_1, window_bounds = array<i64: 2, 80>}, {transform_indices = @transform_2, window_bounds = array<i64: 2, 80>}, {transform_indices = @transform_3, window_bounds = array<i64: 2, 80>}, {transform_indices = @transform_4, window_bounds = array<i64: 1, 10>}]} {
    %c0 = arith.constant 0 : index
    %c0_0 = arith.constant 0 : index
    %0 = vector.load %arg1[%c0, %c0_0] : memref<2x240xf32, #tpu.memory_space<vmem>>, vector<2x240xf32>
    %1 = vector.extract_strided_slice %0 {offsets = [0, 2], sizes = [2, 238], strides = [1, 1]} : vector<2x240xf32> to vector<2x238xf32>
    %2 = vector.extract_strided_slice %0 {offsets = [0, 0], sizes = [2, 238], strides = [1, 1]} : vector<2x240xf32> to vector<2x238xf32>
    %3 = arith.subf %1, %2 : vector<2x238xf32>
    %4 = math.absf %3 : vector<2x238xf32>
    %c0_1 = arith.constant 0 : index
    %c0_2 = arith.constant 0 : index
    %5 = vector.load %arg4[%c0_1, %c0_2] : memref<2x80xf32, #tpu.memory_space<vmem>>, vector<2x80xf32>
    %c0_3 = arith.constant 0 : index
    %c0_4 = arith.constant 0 : index
    %6 = vector.load %arg3[%c0_3, %c0_4] : memref<2x80xf32, #tpu.memory_space<vmem>>, vector<2x80xf32>
    %c0_5 = arith.constant 0 : index
    %c0_6 = arith.constant 0 : index
    %7 = vector.load %arg2[%c0_5, %c0_6] : memref<2x80xf32, #tpu.memory_space<vmem>>, vector<2x80xf32>
    %8 = arith.subf %6, %7 : vector<2x80xf32>
    %9 = math.absf %8 : vector<2x80xf32>
    %10 = arith.mulf %9, %5 : vector<2x80xf32>
    %11 = tpu.iota {dimensions = array<i32: 0>} : vector<238x10xi32>
    %12 = tpu.iota {dimensions = array<i32: 1>} : vector<238x10xi32>
    %c24_i32 = arith.constant 24 : i32
    %13 = vector.broadcast %c24_i32 : i32 to vector<238x10xi32>
    %14 = arith.muli %12, %13 : vector<238x10xi32>
    %15 = arith.cmpi sge, %11, %14 : vector<238x10xi32>
    %c22_i32 = arith.constant 22 : i32
    %16 = vector.broadcast %c22_i32 : i32 to vector<238x10xi32>
    %17 = arith.addi %14, %16 : vector<238x10xi32>
    %18 = arith.cmpi slt, %11, %17 : vector<238x10xi32>
    %19 = arith.andi %15, %18 : vector<238x10xi1>
    %cst = arith.constant 1.000000e+00 : f32
    %cst_7 = arith.constant 0.000000e+00 : f32
    %20 = vector.broadcast %cst : f32 to vector<238x10xf32>
    %21 = vector.broadcast %cst_7 : f32 to vector<238x10xf32>
    %22 = arith.select %19, %20, %21 : vector<238x10xi1>, vector<238x10xf32>
    %cst_8 = arith.constant dense<0.000000e+00> : vector<2x10xf32>
    %23 = tpu.matmul %4, %22, %cst_8 {dimension_numbers = #tpu.dot_dimension_numbers<[1], [0], [0], [1], [0, 0, 1, 1], [], []>} : vector<2x238xf32>, vector<238x10xf32>, vector<2x10xf32> -> vector<2x10xf32>
    %24 = tpu.iota {dimensions = array<i32: 0>} : vector<80x10xi32>
    %25 = tpu.iota {dimensions = array<i32: 1>} : vector<80x10xi32>
    %c8_i32 = arith.constant 8 : i32
    %26 = vector.broadcast %c8_i32 : i32 to vector<80x10xi32>
    %27 = arith.muli %25, %26 : vector<80x10xi32>
    %28 = arith.cmpi sge, %24, %27 : vector<80x10xi32>
    %c8_i32_9 = arith.constant 8 : i32
    %29 = vector.broadcast %c8_i32_9 : i32 to vector<80x10xi32>
    %30 = arith.addi %27, %29 : vector<80x10xi32>
    %31 = arith.cmpi slt, %24, %30 : vector<80x10xi32>
    %32 = arith.andi %28, %31 : vector<80x10xi1>
    %cst_10 = arith.constant 1.000000e+00 : f32
    %cst_11 = arith.constant 0.000000e+00 : f32
    %33 = vector.broadcast %cst_10 : f32 to vector<80x10xf32>
    %34 = vector.broadcast %cst_11 : f32 to vector<80x10xf32>
    %35 = arith.select %32, %33, %34 : vector<80x10xi1>, vector<80x10xf32>
    %cst_12 = arith.constant dense<0.000000e+00> : vector<2x10xf32>
    %36 = tpu.matmul %10, %35, %cst_12 {dimension_numbers = #tpu.dot_dimension_numbers<[1], [0], [0], [1], [0, 0, 1, 1], [], []>} : vector<2x80xf32>, vector<80x10xf32>, vector<2x10xf32> -> vector<2x10xf32>
    %cst_13 = arith.constant 0.000000e+00 : f32
    %37 = vector.broadcast %cst_13 : f32 to vector<2x10xf32>
    %38 = arith.cmpf ogt, %23, %37 : vector<2x10xf32>
    %cst_14 = arith.constant 2.200000e+01 : f32
    %39 = vector.broadcast %cst_14 : f32 to vector<2x10xf32>
    %40 = arith.divf %39, %23 : vector<2x10xf32>
    %cst_15 = arith.constant 0.000000e+00 : f32
    %41 = vector.broadcast %cst_15 : f32 to vector<2x10xf32>
    %42 = arith.select %38, %40, %41 : vector<2x10xi1>, vector<2x10xf32>
    %43 = arith.mulf %36, %42 : vector<2x10xf32>
    %cst_16 = arith.constant dense<0.000000e+00> : vector<10xf32>
    %44 = vector.multi_reduction <add>, %43, %cst_16 [0] : vector<2x10xf32> to vector<10xf32>
    %45 = vector.shape_cast %44 : vector<10xf32> to vector<1x10xf32>
    %c0_17 = arith.constant 0 : index
    %c0_18 = arith.constant 0 : index
    %46 = vector.load %arg5[%c0_17, %c0_18] : memref<1x10xf32, #tpu.memory_space<vmem>>, vector<1x10xf32>
    tpu.vector_store %arg5[%c0_17, %c0_18], %45 {strides = array<i32>} : memref<1x10xf32, #tpu.memory_space<vmem>>, vector<1x10xf32>,
    return
  }
  func.func @transform_0(%arg0: i32) -> (i32, i32) {
    %c0_i32 = arith.constant 0 : i32
    %c0_i32_0 = arith.constant 0 : i32
    return %arg0, %c0_i32 : i32, i32
  }
  func.func @transform_1(%arg0: i32) -> (i32, i32) {
    %c0_i32 = arith.constant 0 : i32
    %c0_i32_0 = arith.constant 0 : i32
    return %arg0, %c0_i32 : i32, i32
  }
  func.func @transform_2(%arg0: i32) -> (i32, i32) {
    %c0_i32 = arith.constant 0 : i32
    %c0_i32_0 = arith.constant 0 : i32
    return %arg0, %c0_i32 : i32, i32
  }
  func.func @transform_3(%arg0: i32) -> (i32, i32) {
    %c0_i32 = arith.constant 0 : i32
    %c0_i32_0 = arith.constant 0 : i32
    return %arg0, %c0_i32 : i32, i32
  }
  func.func @transform_4(%arg0: i32) -> (i32, i32) {
    %c0_i32 = arith.constant 0 : i32
    %c0_i32_0 = arith.constant 0 : i32
    return %arg0, %c0_i32 : i32, i32
  }
}

</mosaic_0001>

<llo_original>
// kernel: tpu_custom_call.1
$region0: #{tpu_custom_call.1}
  #allocation0 [shape = 'u32[]', space=smem, size = 0x4, offset = 0x4, fixed_abs, tag = 'smem constant byte address 0x4 - core index']
  #allocation1 [shape = 'u32[144,128]{1,0:T(1,128)}', space=vmem, size = 0x12000, scoped, tag = 'internal scratch']
  %s0 = inlined_call_operand.hbm [shape: f32[2,240], index: 0, kind: input, shape index: {}]
  %s1 = inlined_call_operand.hbm [shape: f32[2,80], index: 1, kind: input, shape index: {}]
  %s2 = inlined_call_operand.vmem [shape: f32[2,80], index: 2, kind: input, shape index: {}]
  %s3 = inlined_call_operand.vmem [shape: f32[2,80], index: 3, kind: input, shape index: {}]
  %s4 = inlined_call_operand.hbm [shape: f32[1,10], index: 4, kind: output, shape index: {}]
  %s5 = sld [smem:[#allocation0]]
  $region34: #{tpu_custom_call.1} parent=0
    _
  %s7 = ssub.s32 1, %s5
  %s8 = scalar_select 0, %s7, %s5
  $region1: #{tpu_custom_call.1} parent=0
    #allocation2 [shape = 'u8[2048]{0}', space=vmem, size = 0x800, scoped, tag = 'input window, operand 0, single buffered']
    #allocation3 [shape = 's32[1]{0}', space=sflag, size = 0x4, scoped, tag = 'scoped memory for tpu_custom_call.1']
    #allocation4 [shape = 's32[1]{0}', space=sflag, size = 0x4, scoped, tag = 'scoped memory for tpu_custom_call.1']
    #allocation5 [shape = 'u8[1024]{0}', space=vmem, size = 0x400, scoped, tag = 'input window, operand 1, single buffered']
    #allocation6 [shape = 's32[1]{0}', space=sflag, size = 0x4, scoped, tag = 'scoped memory for tpu_custom_call.1']
    #allocation7 [shape = 'u8[512]{0}', space=vmem, size = 0x400, scoped, tag = 'output window, operand 0, single buffered']
    %9 = vsyncpa [#allocation3], 0
    %10 = vsyncpa [#allocation6], 0
    %11 = vsyncpa [#allocation4], 0
    // Predicated region
    $region2: #{tpu_custom_call.1} parent=1 // pred_check
      _
    $region3: #{tpu_custom_call.1} parent=1 // pred_check_branch
      %13 = sbr.rel (0) target = $region5
    $region4: #{tpu_custom_call.1} parent=1 // pred_region
      %s15 = ssub.s32 64, 64
      %16 = vsyncadd [#allocation3], %s15
      %s18 = sshll.u32 [#allocation2], 4
      %s19 = int_to_ptr.vmem [resolvable:$true] %s18
      %21 = dma.hbm_to_vmem [thread:$0]  %s0, 64, %s19, [#allocation3]
    $region5: #{tpu_custom_call.1} parent=1 // pred_fallthru
      _
    // Predicated region
    $region6: #{tpu_custom_call.1} parent=1 // pred_check
      _
    $region7: #{tpu_custom_call.1} parent=1 // pred_check_branch
      %23 = sbr.rel (0) target = $region9
    $region8: #{tpu_custom_call.1} parent=1 // pred_region
      %s25 = ssub.s32 32, 32
      %26 = vsyncadd [#allocation6], %s25
      %s28 = sshll.u32 [#allocation5], 4
      %s29 = int_to_ptr.vmem [resolvable:$true] %s28
      %31 = dma.hbm_to_vmem [thread:$0]  %s1, 32, %s29, [#allocation6]
    $region9: #{tpu_custom_call.1} parent=1 // pred_fallthru
      _
    // Predicated region
    $region10: #{tpu_custom_call.1} parent=1 // pred_check
      _
    $region11: #{tpu_custom_call.1} parent=1 // pred_check_branch
      %33 = sbr.rel (0) target = $region13
    $region12: #{tpu_custom_call.1} parent=1 // pred_region
      _
    $region13: #{tpu_custom_call.1} parent=1 // pred_fallthru
      _
    // Predicated region
    $region14: #{tpu_custom_call.1} parent=1 // pred_check
      _
    $region15: #{tpu_custom_call.1} parent=1 // pred_check_branch
      %35 = sbr.rel (0) target = $region17
    $region16: #{tpu_custom_call.1} parent=1 // pred_region
      _
    $region17: #{tpu_custom_call.1} parent=1 // pred_fallthru
      _
    // Predicated region
    $region18: #{tpu_custom_call.1} parent=1 // pred_check
      _
    $region19: #{tpu_custom_call.1} parent=1 // pred_check_branch
      %37 = sbr.rel (0) target = $region21
    $region20: #{tpu_custom_call.1} parent=1 // pred_region
      %38 = dma.done [#allocation3], 64
    $region21: #{tpu_custom_call.1} parent=1 // pred_fallthru
      _
    // Predicated region
    $region22: #{tpu_custom_call.1} parent=1 // pred_check
      _
    $region23: #{tpu_custom_call.1} parent=1 // pred_check_branch
      %40 = sbr.rel (0) target = $region25
    $region24: #{tpu_custom_call.1} parent=1 // pred_region
      %41 = dma.done [#allocation6], 32
    $region25: #{tpu_custom_call.1} parent=1 // pred_fallthru
      _
    %v42 = vld [vmem:[#allocation2] sm:$0xf]
    %44 = vrot.lane.b32.xlu0 %v42, 2
    %v45 = vpop.permute.xlu0 %44
    %v46 = vrot.slane %v45, 6
    %vm47 = vcmask 15360
    %v48 = vsel %vm47, %v46, %v45
    %v50 = vsub.f32 %v42, %v48
    %v51 = vand.u32 2147483647, %v50
    %v52 = vld [vmem:[%s3] sm:$0x3]
    %v53 = vld [vmem:[%s2] sm:$0x3]
    %v54 = vld [vmem:[#allocation5] sm:$0x3]
    %v55 = vsub.f32 %v53, %v54
    %v56 = vand.u32 2147483647, %v55
    %v57 = vmul.f32 %v56, %v52
    %v58 = vlaneseq
    %v59 = vshrl.u32 %v58, 7
    %v60 = vadd.s32 %v59, 8
    %v61 = vadd.s32 %v59, 16
    %v62 = vadd.s32 %v59, 24
    %v63 = vadd.s32 %v59, 32
    %v64 = vadd.s32 %v59, 40
    %v65 = vadd.s32 %v59, 48
    %v66 = vadd.s32 %v59, 56
    %v67 = vadd.s32 %v59, 64
    %v68 = vadd.s32 %v59, 72
    %v69 = vadd.s32 %v59, 80
    %v70 = vadd.s32 %v59, 88
    %v71 = vadd.s32 %v59, 96
    %v72 = vadd.s32 %v59, 104
    %v73 = vadd.s32 %v59, 112
    %v74 = vadd.s32 %v59, 120
    %v75 = vadd.s32 %v59, 128
    %v76 = vadd.s32 %v59, 136
    %v77 = vadd.s32 %v59, 144
    %v78 = vadd.s32 %v59, 152
    %v79 = vadd.s32 %v59, 160
    %v80 = vadd.s32 %v59, 168
    %v81 = vadd.s32 %v59, 176
    %v82 = vadd.s32 %v59, 184
    %v83 = vadd.s32 %v59, 192
    %v84 = vadd.s32 %v59, 200
    %v85 = vadd.s32 %v59, 208
    %v86 = vadd.s32 %v59, 216
    %v87 = vadd.s32 %v59, 224
    %v88 = vadd.s32 %v59, 232
    %v89 = vlaneseq
    %v90 = vand.u32 %v89, 127
    %v91 = vmul.u32 %v90, 24
    %vm92 = vcmp.ge.s32.totalorder %v59, %v91
    %vm93 = vcmp.ge.s32.totalorder %v60, %v91
    %vm94 = vcmp.ge.s32.totalorder %v61, %v91
    %vm95 = vcmp.ge.s32.totalorder %v62, %v91
    %vm96 = vcmp.ge.s32.totalorder %v63, %v91
    %vm97 = vcmp.ge.s32.totalorder %v64, %v91
    %vm98 = vcmp.ge.s32.totalorder %v65, %v91
    %vm99 = vcmp.ge.s32.totalorder %v66, %v91
    %vm100 = vcmp.ge.s32.totalorder %v67, %v91
    %vm101 = vcmp.ge.s32.totalorder %v68, %v91
    %vm102 = vcmp.ge.s32.totalorder %v69, %v91
    %vm103 = vcmp.ge.s32.totalorder %v70, %v91
    %vm104 = vcmp.ge.s32.totalorder %v71, %v91
    %vm105 = vcmp.ge.s32.totalorder %v72, %v91
    %vm106 = vcmp.ge.s32.totalorder %v73, %v91
    %vm107 = vcmp.ge.s32.totalorder %v74, %v91
    %vm108 = vcmp.ge.s32.totalorder %v75, %v91
    %vm109 = vcmp.ge.s32.totalorder %v76, %v91
    %vm110 = vcmp.ge.s32.totalorder %v77, %v91
    %vm111 = vcmp.ge.s32.totalorder %v78, %v91
    %vm112 = vcmp.ge.s32.totalorder %v79, %v91
    %vm113 = vcmp.ge.s32.totalorder %v80, %v91
    %vm114 = vcmp.ge.s32.totalorder %v81, %v91
    %vm115 = vcmp.ge.s32.totalorder %v82, %v91
    %vm116 = vcmp.ge.s32.totalorder %v83, %v91
    %vm117 = vcmp.ge.s32.totalorder %v84, %v91
    %vm118 = vcmp.ge.s32.totalorder %v85, %v91
    %vm119 = vcmp.ge.s32.totalorder %v86, %v91
    %vm120 = vcmp.ge.s32.totalorder %v87, %v91
    %vm121 = vcmp.ge.s32.totalorder %v88, %v91
    %v122 = vadd.s32 %v91, 22
    %vm123 = vcmp.lt.s32.totalorder %v59, %v122
    %vm124 = vcmp.lt.s32.totalorder %v60, %v122
    %vm125 = vcmp.lt.s32.totalorder %v61, %v122
    %vm126 = vcmp.lt.s32.totalorder %v62, %v122
    %vm127 = vcmp.lt.s32.totalorder %v63, %v122
    %vm128 = vcmp.lt.s32.totalorder %v64, %v122
    %vm129 = vcmp.lt.s32.totalorder %v65, %v122
    %vm130 = vcmp.lt.s32.totalorder %v66, %v122
    %vm131 = vcmp.lt.s32.totalorder %v67, %v122
    %vm132 = vcmp.lt.s32.totalorder %v68, %v122
    %vm133 = vcmp.lt.s32.totalorder %v69, %v122
    %vm134 = vcmp.lt.s32.totalorder %v70, %v122
    %vm135 = vcmp.lt.s32.totalorder %v71, %v122
    %vm136 = vcmp.lt.s32.totalorder %v72, %v122
    %vm137 = vcmp.lt.s32.totalorder %v73, %v122
    %vm138 = vcmp.lt.s32.totalorder %v74, %v122
    %vm139 = vcmp.lt.s32.totalorder %v75, %v122
    %vm140 = vcmp.lt.s32.totalorder %v76, %v122
    %vm141 = vcmp.lt.s32.totalorder %v77, %v122
    %vm142 = vcmp.lt.s32.totalorder %v78, %v122
    %vm143 = vcmp.lt.s32.totalorder %v79, %v122
    %vm144 = vcmp.lt.s32.totalorder %v80, %v122
    %vm145 = vcmp.lt.s32.totalorder %v81, %v122
    %vm146 = vcmp.lt.s32.totalorder %v82, %v122
    %vm147 = vcmp.lt.s32.totalorder %v83, %v122
    %vm148 = vcmp.lt.s32.totalorder %v84, %v122
    %vm149 = vcmp.lt.s32.totalorder %v85, %v122
    %vm150 = vcmp.lt.s32.totalorder %v86, %v122
    %vm151 = vcmp.lt.s32.totalorder %v87, %v122
    %vm152 = vcmp.lt.s32.totalorder %v88, %v122
    %vm153 = vmand %vm92, %vm123
    %vm154 = vmand %vm93, %vm124
    %vm155 = vmand %vm94, %vm125
    %vm156 = vmand %vm95, %vm126
    %vm157 = vmand %vm96, %vm127
    %vm158 = vmand %vm97, %vm128
    %vm159 = vmand %vm98, %vm129
    %vm160 = vmand %vm99, %vm130
    %vm161 = vmand %vm100, %vm131
    %vm162 = vmand %vm101, %vm132
    %vm163 = vmand %vm102, %vm133
    %vm164 = vmand %vm103, %vm134
    %vm165 = vmand %vm104, %vm135
    %vm166 = vmand %vm105, %vm136
    %vm167 = vmand %vm106, %vm137
    %vm168 = vmand %vm107, %vm138
    %vm169 = vmand %vm108, %vm139
    %vm170 = vmand %vm109, %vm140
    %vm171 = vmand %vm110, %vm141
    %vm172 = vmand %vm111, %vm142
    %vm173 = vmand %vm112, %vm143
    %vm174 = vmand %vm113, %vm144
    %vm175 = vmand %vm114, %vm145
    %vm176 = vmand %vm115, %vm146
    %vm177 = vmand %vm116, %vm147
    %vm178 = vmand %vm117, %vm148
    %vm179 = vmand %vm118, %vm149
    %vm180 = vmand %vm119, %vm150
    %vm181 = vmand %vm120, %vm151
    %vm182 = vmand %vm121, %vm152
    %v183 = vsel %vm153, 1.0, 0.0
    %v184 = vsel %vm154, 1.0, 0.0
    %v185 = vsel %vm155, 1.0, 0.0
    %v186 = vsel %vm156, 1.0, 0.0
    %v187 = vsel %vm157, 1.0, 0.0
    %v188 = vsel %vm158, 1.0, 0.0
    %v189 = vsel %vm159, 1.0, 0.0
    %v190 = vsel %vm160, 1.0, 0.0
    %v191 = vsel %vm161, 1.0, 0.0
    %v192 = vsel %vm162, 1.0, 0.0
    %v193 = vsel %vm163, 1.0, 0.0
    %v194 = vsel %vm164, 1.0, 0.0
    %v195 = vsel %vm165, 1.0, 0.0
    %v196 = vsel %vm166, 1.0, 0.0
    %v197 = vsel %vm167, 1.0, 0.0
    %v198 = vsel %vm168, 1.0, 0.0
    %v199 = vsel %vm169, 1.0, 0.0
    %v200 = vsel %vm170, 1.0, 0.0
    %v201 = vsel %vm171, 1.0, 0.0
    %v202 = vsel %vm172, 1.0, 0.0
    %v203 = vsel %vm173, 1.0, 0.0
    %v204 = vsel %vm174, 1.0, 0.0
    %v205 = vsel %vm175, 1.0, 0.0
    %v206 = vsel %vm176, 1.0, 0.0
    %v207 = vsel %vm177, 1.0, 0.0
    %v208 = vsel %vm178, 1.0, 0.0
    %v209 = vsel %vm179, 1.0, 0.0
    %v210 = vsel %vm180, 1.0, 0.0
    %v211 = vsel %vm181, 1.0, 0.0
    %v212 = vsel %vm182, 1.0, 0.0
    %v215 = vunpack.c.l.s4 1983009808
    %v216 = vunpack.c.0.s8 %v215
    %v217 = vlaneseq
    %v218 = vshrl.u32 %v217, 7
    %v219 = vsub.s32 %v216, %v218
    %v220 = vrot.slane %v51, %v219
    %v221 = vcombine.high %v220, %v220
    %222 = vrot.lane.b32.xlu0 %v220, 126
    %v223 = vpop.permute.xlu0 %222
    %224 = vrot.lane.b32.xlu0 %v221, 126
    %v225 = vpop.permute.xlu0 %224
    %vm226 = vcmask 1031168
    %v227 = vsel %vm226, %v223, %v225
    %vm229 = vcmask 900096
    %v230 = vsel %vm229, %v225, 0
    %vm232 = vcmask 1045504
    %v234 = vsel %vm232, %v212, 0
    %236 = vmatprep.subr.mxu0 0.0
    %237 = vmatpush1.msra.mxu0 %v198
    %238 = vmatprep.subr.mxu0 0.0
    %239 = vmatpush1.msra.mxu0 %v197
    %240 = vmatprep.subr.mxu0 0.0
    %241 = vmatpush1.msra.mxu0 %v196
    %242 = vmatprep.subr.mxu0 0.0
    %243 = vmatpush1.msra.mxu0 %v195
    %244 = vmatprep.subr.mxu0 0.0
    %245 = vmatpush1.msra.mxu0 %v194
    %246 = vmatprep.subr.mxu0 0.0
    %247 = vmatpush1.msra.mxu0 %v193
    %248 = vmatprep.subr.mxu0 0.0
    %249 = vmatpush1.msra.mxu0 %v192
    %250 = vmatprep.subr.mxu0 0.0
    %251 = vmatpush1.msra.mxu0 %v191
    %252 = vmatprep.subr.mxu0 0.0
    %253 = vmatpush1.msra.mxu0 %v190
    %254 = vmatprep.subr.mxu0 0.0
    %255 = vmatpush1.msra.mxu0 %v189
    %256 = vmatprep.subr.mxu0 0.0
    %257 = vmatpush1.msra.mxu0 %v188
    %258 = vmatprep.subr.mxu0 0.0
    %259 = vmatpush1.msra.mxu0 %v187
    %260 = vmatprep.subr.mxu0 0.0
    %261 = vmatpush1.msra.mxu0 %v186
    %262 = vmatprep.subr.mxu0 0.0
    %263 = vmatpush1.msra.mxu0 %v185
    %264 = vmatprep.subr.mxu0 0.0
    %265 = vmatpush1.msra.mxu0 %v184
    %266 = vmatprep.subr.mxu0 0.0
    %267 = vmatpush1.msra.mxu0 %v183
    %268 = vmatprep.subr.mxu0 0.0
    %269 = vmatpush2.msra.mxu0 0.0
    %270 = vmatprep.subr.mxu0 0.0
    %271 = vmatpush2.msra.mxu0 0.0
    %272 = vmatprep.subr.mxu0 0.0
    %273 = vmatpush2.msra.mxu0 %v234
    %274 = vmatprep.subr.mxu0 0.0
    %275 = vmatpush2.msra.mxu0 %v211
    %276 = vmatprep.subr.mxu0 0.0
    %277 = vmatpush2.msra.mxu0 %v210
    %278 = vmatprep.subr.mxu0 0.0
    %279 = vmatpush2.msra.mxu0 %v209
    %280 = vmatprep.subr.mxu0 0.0
    %281 = vmatpush2.msra.mxu0 %v208
    %282 = vmatprep.subr.mxu0 0.0
    %283 = vmatpush2.msra.mxu0 %v207
    %284 = vmatprep.subr.mxu0 0.0
    %285 = vmatpush2.msra.mxu0 %v206
    %286 = vmatprep.subr.mxu0 0.0
    %287 = vmatpush2.msra.mxu0 %v205
    %288 = vmatprep.subr.mxu0 0.0
    %289 = vmatpush2.msra.mxu0 %v204
    %290 = vmatprep.subr.mxu0 0.0
    %291 = vmatpush2.msra.mxu0 %v203
    %292 = vmatprep.subr.mxu0 0.0
    %293 = vmatpush2.msra.mxu0 %v202
    %294 = vmatprep.subr.mxu0 0.0
    %295 = vmatpush2.msra.mxu0 %v201
    %296 = vmatprep.subr.mxu0 0.0
    %297 = vmatpush2.msra.mxu0 %v200
    %298 = vmatprep.subr.mxu0 0.0
    %299 = vmatpush2.msra.mxu0 %v199
    %300 = vmatprep.mubr.f32.mxu0 %v230
    %301 = vmatmul.mubr.f32.gmra.mxu0 %v227
    %v302 = vpop.f32.mrf.mxu0
    %v303 = vadd.f32 0.0, %v302
    %v304 = vpop.f32.mrf.mxu0
    %305 = vdwg.mxu0
    %v306 = vmul.u32 %v90, 8
    %vm307 = vcmp.ge.s32.totalorder %v59, %v306
    %vm308 = vcmp.ge.s32.totalorder %v60, %v306
    %vm309 = vcmp.ge.s32.totalorder %v61, %v306
    %vm310 = vcmp.ge.s32.totalorder %v62, %v306
    %vm311 = vcmp.ge.s32.totalorder %v63, %v306
    %vm312 = vcmp.ge.s32.totalorder %v64, %v306
    %vm313 = vcmp.ge.s32.totalorder %v65, %v306
    %vm314 = vcmp.ge.s32.totalorder %v66, %v306
    %vm315 = vcmp.ge.s32.totalorder %v67, %v306
    %vm316 = vcmp.ge.s32.totalorder %v68, %v306
    %v317 = vadd.s32 %v306, 8
    %vm318 = vcmp.lt.s32.totalorder %v59, %v317
    %vm319 = vcmp.lt.s32.totalorder %v60, %v317
    %vm320 = vcmp.lt.s32.totalorder %v61, %v317
    %vm321 = vcmp.lt.s32.totalorder %v62, %v317
    %vm322 = vcmp.lt.s32.totalorder %v63, %v317
    %vm323 = vcmp.lt.s32.totalorder %v64, %v317
    %vm324 = vcmp.lt.s32.totalorder %v65, %v317
    %vm325 = vcmp.lt.s32.totalorder %v66, %v317
    %vm326 = vcmp.lt.s32.totalorder %v67, %v317
    %vm327 = vcmp.lt.s32.totalorder %v68, %v317
    %vm328 = vmand %vm307, %vm318
    %vm329 = vmand %vm308, %vm319
    %vm330 = vmand %vm309, %vm320
    %vm331 = vmand %vm310, %vm321
    %vm332 = vmand %vm311, %vm322
    %vm333 = vmand %vm312, %vm323
    %vm334 = vmand %vm313, %vm324
    %vm335 = vmand %vm314, %vm325
    %vm336 = vmand %vm315, %vm326
    %vm337 = vmand %vm316, %vm327
    %v338 = vsel %vm328, 1.0, 0.0
    %v339 = vsel %vm329, 1.0, 0.0
    %v340 = vsel %vm330, 1.0, 0.0
    %v341 = vsel %vm331, 1.0, 0.0
    %v342 = vsel %vm332, 1.0, 0.0
    %v343 = vsel %vm333, 1.0, 0.0
    %v344 = vsel %vm334, 1.0, 0.0
    %v345 = vsel %vm335, 1.0, 0.0
    %v346 = vsel %vm336, 1.0, 0.0
    %v347 = vsel %vm337, 1.0, 0.0
    %vm348 = vcmask 654336
    %v350 = vsel %vm348, %v57, 0
    %352 = vmatprep.subr.mxu0 0.0
    %353 = vmatpush1.msra.mxu0 0.0
    %354 = vmatprep.subr.mxu0 0.0
    %355 = vmatpush1.msra.mxu0 0.0
    %356 = vmatprep.subr.mxu0 0.0
    %357 = vmatpush1.msra.mxu0 0.0
    %358 = vmatprep.subr.mxu0 0.0
    %359 = vmatpush1.msra.mxu0 0.0
    %360 = vmatprep.subr.mxu0 0.0
    %361 = vmatpush1.msra.mxu0 0.0
    %362 = vmatprep.subr.mxu0 0.0
    %363 = vmatpush1.msra.mxu0 0.0
    %364 = vmatprep.subr.mxu0 0.0
    %365 = vmatpush1.msra.mxu0 %v347
    %366 = vmatprep.subr.mxu0 0.0
    %367 = vmatpush1.msra.mxu0 %v346
    %368 = vmatprep.subr.mxu0 0.0
    %369 = vmatpush1.msra.mxu0 %v345
    %370 = vmatprep.subr.mxu0 0.0
    %371 = vmatpush1.msra.mxu0 %v344
    %372 = vmatprep.subr.mxu0 0.0
    %373 = vmatpush1.msra.mxu0 %v343
    %374 = vmatprep.subr.mxu0 0.0
    %375 = vmatpush1.msra.mxu0 %v342
    %376 = vmatprep.subr.mxu0 0.0
    %377 = vmatpush1.msra.mxu0 %v341
    %378 = vmatprep.subr.mxu0 0.0
    %379 = vmatpush1.msra.mxu0 %v340
    %380 = vmatprep.subr.mxu0 0.0
    %381 = vmatpush1.msra.mxu0 %v339
    %382 = vmatprep.subr.mxu0 0.0
    %383 = vmatpush1.msra.mxu0 %v338
    %384 = vmatprep.subr.mxu0 0.0
    %385 = vmatpush2.msra.mxu0 0.0
    %386 = vmatprep.subr.mxu0 0.0
    %387 = vmatpush2.msra.mxu0 0.0
    %388 = vmatprep.subr.mxu0 0.0
    %389 = vmatpush2.msra.mxu0 0.0
    %390 = vmatprep.subr.mxu0 0.0
    %391 = vmatpush2.msra.mxu0 0.0
    %392 = vmatprep.subr.mxu0 0.0
    %393 = vmatpush2.msra.mxu0 0.0
    %394 = vmatprep.subr.mxu0 0.0
    %395 = vmatpush2.msra.mxu0 0.0
    %396 = vmatprep.subr.mxu0 0.0
    %397 = vmatpush2.msra.mxu0 0.0
    %398 = vmatprep.subr.mxu0 0.0
    %399 = vmatpush2.msra.mxu0 0.0
    %400 = vmatprep.subr.mxu0 0.0
    %401 = vmatpush2.msra.mxu0 0.0
    %402 = vmatprep.subr.mxu0 0.0
    %403 = vmatpush2.msra.mxu0 0.0
    %404 = vmatprep.subr.mxu0 0.0
    %405 = vmatpush2.msra.mxu0 0.0
    %406 = vmatprep.subr.mxu0 0.0
    %407 = vmatpush2.msra.mxu0 0.0
    %408 = vmatprep.subr.mxu0 0.0
    %409 = vmatpush2.msra.mxu0 0.0
    %410 = vmatprep.subr.mxu0 0.0
    %411 = vmatpush2.msra.mxu0 0.0
    %412 = vmatprep.subr.mxu0 0.0
    %413 = vmatpush2.msra.mxu0 0.0
    %414 = vmatprep.subr.mxu0 0.0
    %415 = vmatpush2.msra.mxu0 0.0
    %416 = vmatprep.mubr.f32.mxu0 0.0
    %417 = vmatmul.mubr.f32.gmra.mxu0 %v350
    %v418 = vpop.f32.mrf.mxu0
    %v419 = vadd.f32 0.0, %v418
    %v420 = vpop.f32.mrf.mxu0
    %421 = vdwg.mxu0
    %vm422 = vcmp.gt.f32.partialorder %v303, 0.0
    %v423 = vrcp.pop %v303
    %v424 = vmul.f32 22.0, %v423
    %v425 = vsel %vm422, %v424, 0.0
    %v426 = vmul.f32 %v419, %v425
    %vm427 = vcmask 74752
    %v428 = vsel %vm427, %v426, 0.0
    %v429 = vrot.slane %v428, 4
    %v430 = vadd.f32 %v428, %v429
    %v431 = vrot.slane %v430, 2
    %v432 = vadd.f32 %v430, %v431
    %v433 = vrot.slane %v432, 1
    %v434 = vadd.f32 %v432, %v433
    %vm435 = vcmask 73728
    %436 = vst.msk [vmem:[#allocation7] sm:$0x1] %vm435, %v434
    // Predicated region
    $region26: #{tpu_custom_call.1} parent=1 // pred_check
      _
    $region27: #{tpu_custom_call.1} parent=1 // pred_check_branch
      %438 = sbr.rel (0) target = $region29
    $region28: #{tpu_custom_call.1} parent=1 // pred_region
      %s440 = ssub.s32 16, 16
      %441 = vsyncadd [#allocation4], %s440
      %s443 = sshll.u32 [#allocation7], 4
      %s444 = int_to_ptr.vmem [resolvable:$true] %s443
      %446 = dma.vmem_to_hbm [thread:$0]  %s444, 16, %s4, [#allocation4]
    $region29: #{tpu_custom_call.1} parent=1 // pred_fallthru
      _
    // Predicated region
    $region30: #{tpu_custom_call.1} parent=1 // pred_check
      _
    $region31: #{tpu_custom_call.1} parent=1 // pred_check_branch
      %448 = sbr.rel (0) target = $region33
    $region32: #{tpu_custom_call.1} parent=1 // pred_region
      %449 = dma.done [#allocation4], 16
    $region33: #{tpu_custom_call.1} parent=1 // pred_fallthru
      _
    %450 = vsyncpa [#allocation3], 1
    %451 = vsyncpa [#allocation6], 1
    %452 = vsyncpa [#allocation4], 1

</llo_original>
